<compile_context>
chip_gen: v7x
topology: tpu7x:2x2x1
jax: 0.10.0
libtpu: 0.0.40
codegen_flags: <defaults>
</compile_context>

<pallas_src>
import math
import functools

import jax
import jax.numpy as jnp
from jax.experimental import pallas as pl
from jax.experimental.pallas import tpu as pltpu


# ----------------------------------------------------------------------------
# helpers
# ----------------------------------------------------------------------------

def _vmem_capacity_bytes():
    """Per-chip VMEM capacity (conservative fallback if the query fails)."""
    try:
        info = pltpu.get_tpu_info()
        cap = getattr(info, "vmem_capacity_bytes", None)
        if cap:
            return int(cap)
    except Exception:
        pass
    return 64 * 1024 * 1024          # v7x per-TensorCore VMEM


def _vmem_limit_for(est_bytes, cap_bytes):
    limit = max(32 * 1024 * 1024, 2 * int(est_bytes))
    return int(min(limit, (7 * cap_bytes) // 8))


def _scale_q(q, scale):
    """Fold 1/sqrt(d) into q (cheaper than scaling the Tq x Tk plane).

    For low-precision inputs the multiply is done in f32 and cast back so the
    MXU still sees the native dtype without an extra rounding step."""
    if q.dtype == jnp.float32:
        return q * jnp.float32(scale)
    return (q.astype(jnp.float32) * jnp.float32(scale)).astype(q.dtype)


def _pick_seq_tile(T, target):
    """Largest divisor of T that is <= target and MXU/sublane friendly."""
    if T <= target:
        return T
    best = 1
    for cand in range(1, target + 1):
        if T % cand == 0 and cand % 8 == 0:
            best = cand
    return best if best > 1 else T


def _pick_batch_tile(B, per_batch_bytes, budget_bytes):
    """Largest divisor of B that fits the VMEM budget while keeping the grid
    at >= 2 steps (pipelining + megacore sharding on v7x)."""
    cap = max(1, budget_bytes // max(per_batch_bytes, 1))
    cap = min(cap, max(1, B // 2))
    bt = 1
    for cand in range(1, B + 1):
        if B % cand == 0 and cand <= cap:
            bt = cand
    return bt


# ----------------------------------------------------------------------------
# single-pass kernel (whole Tq x Tk plane per step; small shapes / weights)
# ----------------------------------------------------------------------------

def _simple_kernel(*refs, bt, has_mask, with_weights, scale):
    if has_mask:
        valid_ref = refs[0]
        refs = refs[1:]
    q_ref, k_ref, v_ref, o_ref = refs[:4]
    w_ref = refs[4] if with_weights else None

    q = _scale_q(q_ref[...], scale)              # native dtype into the MXU
    k = k_ref[...]
    v = v_ref[...]

    # scores = (q / sqrt(d)) @ k^T : contraction on the shared feature axis,
    # no materialized transpose, f32 accumulator.
    scores = jnp.einsum("bqd,bkd->bqk", q, k,
                        preferred_element_type=jnp.float32)

    if has_mask:
        b0 = pl.program_id(0) * bt
        # (bt,1,1) valid-length plane (tiny unrolled select chain), then a
        # single compare + select against the full scores plane.
        b_iota = jax.lax.broadcasted_iota(jnp.int32, (bt, 1, 1), 0)
        vl = jnp.zeros((bt, 1, 1), jnp.int32)
        for i in range(bt):
            vl = jnp.where(b_iota == i, valid_ref[b0 + i], vl)
        col = jax.lax.broadcasted_iota(jnp.int32, scores.shape, 2)
        scores = jnp.where(col < vl, scores, jnp.float32(-1.0e6))

    # numerically stable softmax over the key axis
    m = jnp.max(scores, axis=-1, keepdims=True)
    e = jnp.exp(scores - m)
    denom = jnp.sum(e, axis=-1, keepdims=True)
    if with_weights:
        attn = e / denom                          # exact: weights sum to 1
        w_ref[...] = attn.astype(w_ref.dtype)
    else:
        attn = e * pl.reciprocal(denom, approx=True)   # EUP vrcp slot

    out = jnp.einsum("bqk,bkv->bqv", attn.astype(v.dtype), v,
                     preferred_element_type=jnp.float32)
    o_ref[...] = out.astype(o_ref.dtype)


def _simple_attention(queries, keys, values, valid_lens, return_weights,
                      cap_bytes):
    B, Tq, d = queries.shape
    _, Tk, _ = keys.shape
    dv = values.shape[-1]
    has_mask = valid_lens is not None
    itemsize = queries.dtype.itemsize
    scale = 1.0 / math.sqrt(d)

    io_elems = (Tq * d + Tk * d + Tk * dv + Tq * dv
                + (Tq * Tk if return_weights else 0))
    per_batch = 2 * io_elems * itemsize + 3 * Tq * Tk * 4   # incl. f32 temps
    bt = _pick_batch_tile(B, per_batch, cap_bytes // 4)
    grid = (B // bt,)

    kernel = functools.partial(_simple_kernel, bt=bt, has_mask=has_mask,
                               with_weights=return_weights, scale=scale)

    if has_mask:
        idx = lambda i, vl: (i, 0, 0)
    else:
        idx = lambda i: (i, 0, 0)

    in_specs = [
        pl.BlockSpec((bt, Tq, d), idx),
        pl.BlockSpec((bt, Tk, d), idx),
        pl.BlockSpec((bt, Tk, dv), idx),
    ]
    out_shape = [jax.ShapeDtypeStruct((B, Tq, dv), queries.dtype)]
    out_specs = [pl.BlockSpec((bt, Tq, dv), idx)]
    if return_weights:
        out_shape.append(jax.ShapeDtypeStruct((B, Tq, Tk), queries.dtype))
        out_specs.append(pl.BlockSpec((bt, Tq, Tk), idx))

    grid_spec = pltpu.PrefetchScalarGridSpec(
        num_scalar_prefetch=1 if has_mask else 0,
        grid=grid,
        in_specs=in_specs,
        out_specs=out_specs,
    )

    call = pl.pallas_call(
        kernel,
        out_shape=tuple(out_shape),
        grid_spec=grid_spec,
        compiler_params=pltpu.CompilerParams(
            dimension_semantics=("parallel",),
            vmem_limit_bytes=_vmem_limit_for(bt * per_batch, cap_bytes)),
    )

    if has_mask:
        results = call(valid_lens.astype(jnp.int32), queries, keys, values)
    else:
        results = call(queries, keys, values)

    if return_weights:
        return results[0], results[1]
    return results[0]


# ----------------------------------------------------------------------------
# flash-style kernel (Tk tiled, online softmax) for long sequences
# ----------------------------------------------------------------------------

def _flash_kernel(*refs, has_mask, scale, tk):
    if has_mask:
        valid_ref = refs[0]
        refs = refs[1:]
    q_ref, k_ref, v_ref, o_ref, m_sc, l_sc, acc_sc = refs

    kv = pl.program_id(2)

    @pl.when(kv == 0)
    def _init():
        m_sc[...] = jnp.full_like(m_sc, -jnp.inf)
        l_sc[...] = jnp.zeros_like(l_sc)
        acc_sc[...] = jnp.zeros_like(acc_sc)

    if has_mask:
        vlen = valid_ref[pl.program_id(0)]

    def _step():
        q = _scale_q(q_ref[0], scale)                      # (tq, d)
        k = k_ref[0]                                       # (tk, d)
        v = v_ref[0]                                       # (tk, dv)
        s = jax.lax.dot_general(q, k, (((1,), (1,)), ((), ())),
                                preferred_element_type=jnp.float32)  # (tq,tk)
        if has_mask:
            col = kv * tk + jax.lax.broadcasted_iota(jnp.int32, s.shape, 1)
            s = jnp.where(col < vlen, s, jnp.float32(-1.0e6))
        m_prev = m_sc[...]
        m_new = jnp.maximum(m_prev, jnp.max(s, axis=-1, keepdims=True))
        alpha = jnp.exp(m_prev - m_new)
        p = jnp.exp(s - m_new)
        l_sc[...] = alpha * l_sc[...] + jnp.sum(p, axis=-1, keepdims=True)
        acc_sc[...] = alpha * acc_sc[...] + jax.lax.dot_general(
            p.astype(v.dtype), v, (((1,), (0,)), ((), ())),
            preferred_element_type=jnp.float32)
        m_sc[...] = m_new

    if has_mask:
        # Skip key blocks that are entirely masked (they contribute ~0).
        # valid_len == 0 keeps computing so the reference's uniform-softmax
        # semantics are preserved.
        pl.when(jnp.logical_or(kv * tk < vlen, vlen == 0))(_step)
    else:
        _step()

    @pl.when(kv == pl.num_programs(2) - 1)
    def _finalize():
        o_ref[0] = (acc_sc[...] *
                    pl.reciprocal(l_sc[...], approx=True)).astype(o_ref.dtype)


def _flash_attention(queries, keys, values, valid_lens, cap_bytes,
                     tq_target, tk_target):
    B, Tq, d = queries.shape
    _, Tk, _ = keys.shape
    dv = values.shape[-1]
    has_mask = valid_lens is not None
    itemsize = queries.dtype.itemsize
    scale = 1.0 / math.sqrt(d)

    tq = _pick_seq_tile(Tq, tq_target)
    tk = _pick_seq_tile(Tk, tk_target)
    grid = (B, Tq // tq, Tk // tk)

    est = (2 * (tq * d + tk * d + tk * dv + tq * dv) * itemsize
           + (tq * dv + 2 * tq) * 4 + 3 * tq * tk * 4)

    kernel = functools.partial(_flash_kernel, has_mask=has_mask,
                               scale=scale, tk=tk)

    if has_mask:
        qmap = lambda b, qi, kv, vl: (b, qi, 0)
        kmap = lambda b, qi, kv, vl: (b, kv, 0)
        omap = lambda b, qi, kv, vl: (b, qi, 0)
    else:
        qmap = lambda b, qi, kv: (b, qi, 0)
        kmap = lambda b, qi, kv: (b, kv, 0)
        omap = lambda b, qi, kv: (b, qi, 0)

    grid_spec = pltpu.PrefetchScalarGridSpec(
        num_scalar_prefetch=1 if has_mask else 0,
        grid=grid,
        in_specs=[
            pl.BlockSpec((1, tq, d), qmap),
            pl.BlockSpec((1, tk, d), kmap),
            pl.BlockSpec((1, tk, dv), kmap),
        ],
        out_specs=[pl.BlockSpec((1, tq, dv), omap)],
        scratch_shapes=[
            pltpu.VMEM((tq, 1), jnp.float32),      # running max
            pltpu.VMEM((tq, 1), jnp.float32),      # running denom
            pltpu.VMEM((tq, dv), jnp.float32),     # output accumulator
        ],
    )

    call = pl.pallas_call(
        kernel,
        out_shape=(jax.ShapeDtypeStruct((B, Tq, dv), queries.dtype),),
        grid_spec=grid_spec,
        compiler_params=pltpu.CompilerParams(
            dimension_semantics=("parallel", "parallel", "arbitrary"),
            vmem_limit_bytes=_vmem_limit_for(est, cap_bytes)),
    )

    if has_mask:
        (out,) = call(valid_lens.astype(jnp.int32), queries, keys, values)
    else:
        (out,) = call(queries, keys, values)
    return out


# ----------------------------------------------------------------------------
# public wrapper
# ----------------------------------------------------------------------------

@functools.partial(jax.jit, static_argnames=("return_weights", "impl",
                                              "tq_target", "tk_target"))
def dot_product_attention(queries, keys, values, valid_lens=None, *,
                          return_weights=False, impl="auto",
                          tq_target=256, tk_target=512):
    """Pallas TPU scaled dot-product attention (eval-mode forward).

    queries: (B, Tq, d), keys: (B, Tk, d), values: (B, Tk, dv)
    valid_lens: None or (B,) int -- per-batch valid key length.
    Returns output (B, Tq, dv); if return_weights, also (B, Tq, Tk) weights.
    impl: "auto" | "simple" | "flash".
    """
    B, Tq, d = queries.shape
    _, Tk, dk = keys.shape
    _, _, dv = values.shape
    assert d == dk and keys.shape[0] == B and values.shape[0] == B
    assert values.shape[1] == Tk

    cap_bytes = _vmem_capacity_bytes()

    # would the single-pass kernel fit per batch element?
    itemsize = queries.dtype.itemsize
    io_elems = (Tq * d + Tk * d + Tk * dv + Tq * dv
                + (Tq * Tk if return_weights else 0))
    per_batch = 2 * io_elems * itemsize + 3 * Tq * Tk * 4

    use_flash = (impl == "flash") or (impl == "auto" and not return_weights
                                      and per_batch > cap_bytes // 4)

    if use_flash and not return_weights:
        return _flash_attention(queries, keys, values, valid_lens,
                                cap_bytes, tq_target, tk_target)
    return _simple_attention(queries, keys, values, valid_lens,
                             return_weights, cap_bytes)


# ----------------------------------------------------------------------------
# pure-JAX reference mirroring the PyTorch forward
# ----------------------------------------------------------------------------

def _reference(queries, keys, values, valid_lens=None):
    d = queries.shape[-1]
    scores = jnp.einsum("bqd,bkd->bqk", queries, keys) / math.sqrt(d)
    if valid_lens is not None:
        Tk = scores.shape[-1]
        col = jnp.arange(Tk)[None, None, :]
        mask = col < valid_lens[:, None, None]
        scores = jnp.where(mask, scores, -1.0e6)
    w = jax.nn.softmax(scores, axis=-1)
    return jnp.einsum("bqk,bkv->bqv", w, values), w


if __name__ == "__main__":
    key = jax.random.PRNGKey(0)
    kq, kk, kvv, k_rest = jax.random.split(key, 4)

    # --- small demo shapes (single-pass path) ---
    B, Tq, Tk, d, dv = 2, 8, 8, 32, 32
    queries = jax.random.normal(kq, (B, Tq, d), dtype=jnp.float32)
    keys = jax.random.normal(kk, (B, Tk, d), dtype=jnp.float32)
    values = jax.random.normal(kvv, (B, Tk, dv), dtype=jnp.float32)
    valid_lens = jnp.array([3, 6], dtype=jnp.int32)

    out, attn_w = dot_product_attention(queries, keys, values, valid_lens,
                                        return_weights=True)
    jax.block_until_ready((out, attn_w))
    ref_out, ref_w = _reference(queries, keys, values, valid_lens)
    assert jnp.allclose(out, ref_out, atol=3e-3, rtol=3e-3), "output mismatch"
    assert jnp.allclose(attn_w, ref_w, atol=3e-3, rtol=3e-3), "weights mismatch"

    out_m = dot_product_attention(queries, keys, values, valid_lens)
    jax.block_until_ready(out_m)
    assert jnp.allclose(out_m, ref_out, atol=3e-3, rtol=3e-3), "masked mismatch"

    out_u = dot_product_attention(queries, keys, values, None)
    jax.block_until_ready(out_u)
    ref_u, _ = _reference(queries, keys, values, None)
    assert jnp.allclose(out_u, ref_u, atol=3e-3, rtol=3e-3), "unmasked mismatch"

    # --- moderate shapes exercising the flash (Tk-tiled) path ---
    B2, Tq2, Tk2, d2, dv2 = 2, 256, 1024, 64, 64
    kq2, kk2, kv2 = jax.random.split(k_rest, 3)
    q2 = jax.random.normal(kq2, (B2, Tq2, d2), dtype=jnp.float32)
    k2 = jax.random.normal(kk2, (B2, Tk2, d2), dtype=jnp.float32)
    v2 = jax.random.normal(kv2, (B2, Tk2, dv2), dtype=jnp.float32)
    vl2 = jnp.array([100, 1024], dtype=jnp.int32)   # one block fully masked

    out_f = dot_product_attention(q2, k2, v2, vl2, impl="flash")
    jax.block_until_ready(out_f)
    ref_f, _ = _reference(q2, k2, v2, vl2)
    assert jnp.allclose(out_f, ref_f, atol=3e-3, rtol=3e-3), "flash masked mismatch"

    out_fu = dot_product_attention(q2, k2, v2, None, impl="flash")
    jax.block_until_ready(out_fu)
    ref_fu, _ = _reference(q2, k2, v2, None)
    assert jnp.allclose(out_fu, ref_fu, atol=3e-3, rtol=3e-3), "flash unmasked mismatch"

    print("KERNEL_OK")
</pallas_src>

<mosaic_0001>
module attributes {stable_mosaic.version = 11 : i64} {
  func.func @_simple_kernel(%arg0: i32, %arg1: memref<2xi32, #tpu.memory_space<smem>>, %arg2: memref<1x8x32xf32, #tpu.memory_space<vmem>>, %arg3: memref<1x8x32xf32, #tpu.memory_space<vmem>>, %arg4: memref<1x8x32xf32, #tpu.memory_space<vmem>>, %arg5: memref<1x8x32xf32, #tpu.memory_space<vmem>>, %arg6: memref<1x8x8xf32, #tpu.memory_space<vmem>>) attributes {dimension_semantics = [#tpu.dimension_semantics<parallel>], iteration_bounds = array<i64: 2>, scalar_prefetch = 1 : i64, scratch_operands = 0 : i64, tpu.core_type = #tpu.core_type<tc>, window_params = [{transform_indices = @transform_0, window_bounds = array<i64: 1, 8, 32>}, {transform_indices = @transform_1, window_bounds = array<i64: 1, 8, 32>}, {transform_indices = @transform_2, window_bounds = array<i64: 1, 8, 32>}, {transform_indices = @transform_3, window_bounds = array<i64: 1, 8, 32>}, {transform_indices = @transform_4, window_bounds = array<i64: 1, 8, 8>}]} {
    %c0 = arith.constant 0 : index
    %c0_0 = arith.constant 0 : index
    %c0_1 = arith.constant 0 : index
    %0 = vector.load %arg2[%c0, %c0_0, %c0_1] : memref<1x8x32xf32, #tpu.memory_space<vmem>>, vector<1x8x32xf32>
    %cst = arith.constant 0.176776692 : f32
    %1 = vector.broadcast %cst : f32 to vector<1x8x32xf32>
    %2 = arith.mulf %0, %1 : vector<1x8x32xf32>
    %c0_2 = arith.constant 0 : index
    %c0_3 = arith.constant 0 : index
    %c0_4 = arith.constant 0 : index
    %3 = vector.load %arg3[%c0_2, %c0_3, %c0_4] : memref<1x8x32xf32, #tpu.memory_space<vmem>>, vector<1x8x32xf32>
    %c0_5 = arith.constant 0 : index
    %c0_6 = arith.constant 0 : index
    %c0_7 = arith.constant 0 : index
    %4 = vector.load %arg4[%c0_5, %c0_6, %c0_7] : memref<1x8x32xf32, #tpu.memory_space<vmem>>, vector<1x8x32xf32>
    "tpu.trace_start"() <{level = 10 : i32, message = "bqd,bkd->bqk"}> : () -> ()
    %cst_8 = arith.constant dense<0.000000e+00> : vector<1x8x8xf32>
    %5 = tpu.matmul %2, %3, %cst_8 {dimension_numbers = #tpu.dot_dimension_numbers<[2], [2], [1], [1], [0, 0, 0, 1, 1, 1], [0], [0]>} : vector<1x8x32xf32>, vector<1x8x32xf32>, vector<1x8x8xf32> -> vector<1x8x8xf32>
    "tpu.trace_stop"() : () -> ()
    %c1_i32 = arith.constant 1 : i32
    %6 = arith.muli %arg0, %c1_i32 : i32
    %7 = tpu.iota {dimensions = array<i32: 0>} : vector<1x1x1xi32>
    %c0_i32 = arith.constant 0 : i32
    %8 = vector.broadcast %c0_i32 : i32 to vector<1x1x1xi32>
    %c0_i32_9 = arith.constant 0 : i32
    %9 = vector.broadcast %c0_i32_9 : i32 to vector<1x1x1xi32>
    %10 = arith.cmpi eq, %7, %9 : vector<1x1x1xi32>
    %c0_i32_10 = arith.constant 0 : i32
    %11 = arith.addi %6, %c0_i32_10 : i32
    %12 = arith.index_cast %11 : i32 to index
    %13 = memref.load %arg1[%12] : memref<2xi32, #tpu.memory_space<smem>>
    %14 = vector.broadcast %13 : i32 to vector<1x1x1xi32>
    %15 = arith.select %10, %14, %8 : vector<1x1x1xi1>, vector<1x1x1xi32>
    %16 = tpu.iota {dimensions = array<i32: 2>} : vector<1x8x8xi32>
    %17 = vector.broadcast %15 : vector<1x1x1xi32> to vector<1x8x8xi32>
    %18 = arith.cmpi slt, %16, %17 : vector<1x8x8xi32>
    %cst_11 = arith.constant -1.000000e+06 : f32
    %19 = vector.broadcast %cst_11 : f32 to vector<1x8x8xf32>
    %20 = arith.select %18, %5, %19 : vector<1x8x8xi1>, vector<1x8x8xf32>
    %cst_12 = arith.constant dense<0xFF800000> : vector<1x8xf32>
    %21 = vector.multi_reduction <maximumf>, %20, %cst_12 [2] : vector<1x8x8xf32> to vector<1x8xf32>
    %22 = vector.shape_cast %21 : vector<1x8xf32> to vector<1x8x1xf32>
    %23 = vector.broadcast %22 : vector<1x8x1xf32> to vector<1x8x8xf32>
    %24 = arith.subf %20, %23 : vector<1x8x8xf32>
    %25 = math.exp %24 : vector<1x8x8xf32>
    %cst_13 = arith.constant dense<0.000000e+00> : vector<1x8xf32>
    %26 = vector.multi_reduction <add>, %25, %cst_13 [2] : vector<1x8x8xf32> to vector<1x8xf32>
    %27 = vector.shape_cast %26 : vector<1x8xf32> to vector<1x8x1xf32>
    %28 = vector.broadcast %27 : vector<1x8x1xf32> to vector<1x8x8xf32>
    %29 = arith.divf %25, %28 : vector<1x8x8xf32>
    %c0_14 = arith.constant 0 : index
    %c0_15 = arith.constant 0 : index
    %c0_16 = arith.constant 0 : index
    %30 = vector.load %arg6[%c0_14, %c0_15, %c0_16] : memref<1x8x8xf32, #tpu.memory_space<vmem>>, vector<1x8x8xf32>
    tpu.vector_store %arg6[%c0_14, %c0_15, %c0_16], %29 {strides = array<i32>} : memref<1x8x8xf32, #tpu.memory_space<vmem>>, vector<1x8x8xf32>,
    "tpu.trace_start"() <{level = 10 : i32, message = "bqk,bkv->bqv"}> : () -> ()
    %cst_17 = arith.constant dense<0.000000e+00> : vector<1x8x32xf32>
    %31 = tpu.matmul %29, %4, %cst_17 {dimension_numbers = #tpu.dot_dimension_numbers<[2], [1], [1], [2], [0, 0, 0, 1, 1, 2], [0], [0]>} : vector<1x8x8xf32>, vector<1x8x32xf32>, vector<1x8x32xf32> -> vector<1x8x32xf32>
    "tpu.trace_stop"() : () -> ()
    %c0_18 = arith.constant 0 : index
    %c0_19 = arith.constant 0 : index
    %c0_20 = arith.constant 0 : index
    %32 = vector.load %arg5[%c0_18, %c0_19, %c0_20] : memref<1x8x32xf32, #tpu.memory_space<vmem>>, vector<1x8x32xf32>
    tpu.vector_store %arg5[%c0_18, %c0_19, %c0_20], %31 {strides = array<i32>} : memref<1x8x32xf32, #tpu.memory_space<vmem>>, vector<1x8x32xf32>,
    return
  }
  func.func @transform_0(%arg0: i32, %arg1: memref<2xi32, #tpu.memory_space<smem>>) -> (i32, i32, i32) {
    %c0_i32 = arith.constant 0 : i32
    %c0_i32_0 = arith.constant 0 : i32
    %c0_i32_1 = arith.constant 0 : i32
    return %arg0, %c0_i32, %c0_i32_0 : i32, i32, i32
  }
  func.func @transform_1(%arg0: i32, %arg1: memref<2xi32, #tpu.memory_space<smem>>) -> (i32, i32, i32) {
    %c0_i32 = arith.constant 0 : i32
    %c0_i32_0 = arith.constant 0 : i32
    %c0_i32_1 = arith.constant 0 : i32
    return %arg0, %c0_i32, %c0_i32_0 : i32, i32, i32
  }
  func.func @transform_2(%arg0: i32, %arg1: memref<2xi32, #tpu.memory_space<smem>>) -> (i32, i32, i32) {
    %c0_i32 = arith.constant 0 : i32
    %c0_i32_0 = arith.constant 0 : i32
    %c0_i32_1 = arith.constant 0 : i32
    return %arg0, %c0_i32, %c0_i32_0 : i32, i32, i32
  }
  func.func @transform_3(%arg0: i32, %arg1: memref<2xi32, #tpu.memory_space<smem>>) -> (i32, i32, i32) {
    %c0_i32 = arith.constant 0 : i32
    %c0_i32_0 = arith.constant 0 : i32
    %c0_i32_1 = arith.constant 0 : i32
    return %arg0, %c0_i32, %c0_i32_0 : i32, i32, i32
  }
  func.func @transform_4(%arg0: i32, %arg1: memref<2xi32, #tpu.memory_space<smem>>) -> (i32, i32, i32) {
    %c0_i32 = arith.constant 0 : i32
    %c0_i32_0 = arith.constant 0 : i32
    %c0_i32_1 = arith.constant 0 : i32
    return %arg0, %c0_i32, %c0_i32_0 : i32, i32, i32
  }
}

</mosaic_0001>

<llo_original>
// kernel: dot_product_attention.1
$region0: #{dot_product_attention.1}
  #allocation0 [shape = 'u32[]', space=smem, size = 0x4, offset = 0x4, fixed_abs, tag = 'smem constant byte address 0x4 - core index']
  #allocation1 [shape = 'u32[144,128]{1,0:T(1,128)}', space=vmem, size = 0x12000, scoped, tag = 'internal scratch']
  #allocation2 [shape = 's32[1]{0}', space=sflag, size = 0x4, scoped, tag = 'scoped memory for dot_product_attention.1']
  #allocation3 [shape = 'u8[512]{0}', space=smem, size = 0x200, scoped, tag = 'prefetched SMEM operand 0']
  %s0 = inlined_call_operand.vmem [shape: s32[2], index: 0, kind: input, shape index: {}]
  %s1 = inlined_call_operand.hbm [shape: f32[2,8,32], index: 1, kind: input, shape index: {}]
  %s2 = inlined_call_operand.hbm [shape: f32[2,8,32], index: 2, kind: input, shape index: {}]
  %s3 = inlined_call_operand.hbm [shape: f32[2,8,32], index: 3, kind: input, shape index: {}]
  %s4 = inlined_call_operand.hbm [shape: f32[2,8,32], index: 4, kind: output, shape index: {0}]
  %s5 = inlined_call_operand.hbm [shape: f32[2,8,8], index: 5, kind: output, shape index: {1}]
  %6 = xla_tuple %s4, %s5
  %s7 = sld [smem:[#allocation0]]
  $region65: #{dot_product_attention.1} parent=0
    _
  %s9 = ssub.s32 1, %s7
  %s10 = scalar_select 0, %s9, %s7
  %s11 = sshll.u32 %s0, 4
  %s12 = int_to_ptr.vmem [resolvable:$true] %s11
  %14 = dma.vmem_to_smem %s12, 16, [#allocation3], [#allocation2]
  %15 = dma.done [#allocation2], 16
  %16 = sfence
  $region1: #{dot_product_attention.1} parent=0
    #allocation4 [shape = 'u8[8192]{0}', space=vmem, size = 0x2000, scoped, tag = 'input window, operand 1']
    #allocation5 [shape = 's32[2]{0}', space=sflag, size = 0x8, scoped, tag = 'scoped memory for dot_product_attention.1']
    #allocation6 [shape = 's32[2]{0}', space=sflag, size = 0x8, scoped, tag = 'scoped memory for dot_product_attention.1']
    #allocation7 [shape = 'u8[8192]{0}', space=vmem, size = 0x2000, scoped, tag = 'input window, operand 2']
    #allocation8 [shape = 's32[2]{0}', space=sflag, size = 0x8, scoped, tag = 'scoped memory for dot_product_attention.1']
    #allocation9 [shape = 'u8[8192]{0}', space=vmem, size = 0x2000, scoped, tag = 'input window, operand 3']
    #allocation10 [shape = 'u8[8192]{0}', space=vmem, size = 0x2000, scoped, tag = 'output window, operand 0']
    #allocation11 [shape = 'u8[8192]{0}', space=vmem, size = 0x2000, scoped, tag = 'output window, operand 1']
    #allocation12 [shape = 's32[2]{0}', space=sflag, size = 0x8, scoped, tag = 'scoped memory for dot_product_attention.1']
    %17 = vsyncpa [#allocation5], 0
    %s18 = scalar_lea.sflag [#allocation5], 1
    %19 = vsyncpa %s18, 0
    %20 = vsyncpa [#allocation8], 0
    %s21 = scalar_lea.sflag [#allocation8], 1
    %22 = vsyncpa %s21, 0
    %23 = vsyncpa [#allocation6], 0
    %s24 = scalar_lea.sflag [#allocation6], 1
    %25 = vsyncpa %s24, 0
    %26 = vsyncpa [#allocation12], 0
    %s27 = scalar_lea.sflag [#allocation12], 1
    %28 = vsyncpa %s27, 0
    loop: start=0, step=1, limit=4
    $region2: #{dot_product_attention.1} parent=1 // loop_pre_header
      _
    $region3: #{dot_product_attention.1} parent=1 // loop_header
      %s30 = sphi 0, %s34
      %p31 = scmp.ge.s32.totalorder %s30, 4
      %s40 = sphi 0, %s42
      %s43 = sphi 0, %s40
      %s44 = sphi 0, %s43
      %s60 = sphi 0, %s44
      %s66 = sphi 0, %s68
      %s69 = sphi 0, %s66
      %s70 = sphi 0, %s69
      %s86 = sphi 0, %s70
      %s92 = sphi 0, %s94
      %s95 = sphi 0, %s92
      %s96 = sphi 0, %s95
      %s112 = sphi 0, %s96
      %s118 = sphi 0, %s120
      %s121 = sphi 0, %s118
      %s122 = sphi 0, %s121
      %s138 = sphi 0, %s122
      %s144 = sphi 0, %s146
      %s147 = sphi 0, %s144
      %s148 = sphi 0, %s147
      %s164 = sphi 0, %s148
    $region4: #{dot_product_attention.1} parent=1 // loop_header_branch
      %33 = sbr.rel (%p31) target = $region8
    $region5: #{dot_product_attention.1} parent=1 // loop_body
      %s35 = ssub.s32 %s30, 1
      %s36 = ssub.s32 %s30, 2
      %s37 = sadd.s32 %s30, 1
      %s38 = ssub.s32 %s30, %s37
      %p39 = scmp.eq.s32.totalorder %s38, 0
      %s41 = sadd.s32 %s40, 1
      %s42 = scalar_select %p39, %s40, %s41
      %p45 = pneg %p39
      %p46 = scmp.eq.s32.totalorder %s30, 1
      %p47 = por %p45, %p46
      %p48 = scmp.ne.s32.totalorder %s40, %s43
      %p49 = scmp.eq.s32.totalorder %s30, 0
      %p50 = por %p48, %p49
      %p51 = scmp.ne.s32.totalorder %s40, %s43
      %p52 = scmp.eq.s32.totalorder %s35, 1
      %p53 = por %p51, %p52
      %p54 = scmp.ne.s32.totalorder %s43, %s44
      %p55 = scmp.eq.s32.totalorder %s35, 0
      %p56 = por %p54, %p55
      %p57 = scmp.ne.s32.totalorder %s43, %s44
      %p58 = scmp.eq.s32.totalorder %s36, 1
      %p59 = por %p57, %p58
      %p61 = scmp.ne.s32.totalorder %s44, %s60
      %p62 = scmp.eq.s32.totalorder %s36, 0
      %p63 = por %p61, %p62
      %s64 = ssub.s32 %s30, %s37
      %p65 = scmp.eq.s32.totalorder %s64, 0
      %s67 = sadd.s32 %s66, 1
      %s68 = scalar_select %p65, %s66, %s67
      %p71 = pneg %p65
      %p72 = scmp.eq.s32.totalorder %s30, 1
      %p73 = por %p71, %p72
      %p74 = scmp.ne.s32.totalorder %s66, %s69
      %p75 = scmp.eq.s32.totalorder %s30, 0
      %p76 = por %p74, %p75
      %p77 = scmp.ne.s32.totalorder %s66, %s69
      %p78 = scmp.eq.s32.totalorder %s35, 1
      %p79 = por %p77, %p78
      %p80 = scmp.ne.s32.totalorder %s69, %s70
      %p81 = scmp.eq.s32.totalorder %s35, 0
      %p82 = por %p80, %p81
      %p83 = scmp.ne.s32.totalorder %s69, %s70
      %p84 = scmp.eq.s32.totalorder %s36, 1
      %p85 = por %p83, %p84
      %p87 = scmp.ne.s32.totalorder %s70, %s86
      %p88 = scmp.eq.s32.totalorder %s36, 0
      %p89 = por %p87, %p88
      %s90 = ssub.s32 %s30, %s37
      %p91 = scmp.eq.s32.totalorder %s90, 0
      %s93 = sadd.s32 %s92, 1
      %s94 = scalar_select %p91, %s92, %s93
      %p97 = pneg %p91
      %p98 = scmp.eq.s32.totalorder %s30, 1
      %p99 = por %p97, %p98
      %p100 = scmp.ne.s32.totalorder %s92, %s95
      %p101 = scmp.eq.s32.totalorder %s30, 0
      %p102 = por %p100, %p101
      %p103 = scmp.ne.s32.totalorder %s92, %s95
      %p104 = scmp.eq.s32.totalorder %s35, 1
      %p105 = por %p103, %p104
      %p106 = scmp.ne.s32.totalorder %s95, %s96
      %p107 = scmp.eq.s32.totalorder %s35, 0
      %p108 = por %p106, %p107
      %p109 = scmp.ne.s32.totalorder %s95, %s96
      %p110 = scmp.eq.s32.totalorder %s36, 1
      %p111 = por %p109, %p110
      %p113 = scmp.ne.s32.totalorder %s96, %s112
      %p114 = scmp.eq.s32.totalorder %s36, 0
      %p115 = por %p113, %p114
      %s116 = ssub.s32 %s30, %s37
      %p117 = scmp.eq.s32.totalorder %s116, 0
      %s119 = sadd.s32 %s118, 1
      %s120 = scalar_select %p117, %s118, %s119
      %p123 = pneg %p117
      %p124 = scmp.eq.s32.totalorder %s30, 1
      %p125 = por %p123, %p124
      %p126 = scmp.ne.s32.totalorder %s118, %s121
      %p127 = scmp.eq.s32.totalorder %s30, 0
      %p128 = por %p126, %p127
      %p129 = scmp.ne.s32.totalorder %s118, %s121
      %p130 = scmp.eq.s32.totalorder %s35, 1
      %p131 = por %p129, %p130
      %p132 = scmp.ne.s32.totalorder %s121, %s122
      %p133 = scmp.eq.s32.totalorder %s35, 0
      %p134 = por %p132, %p133
      %p135 = scmp.ne.s32.totalorder %s121, %s122
      %p136 = scmp.eq.s32.totalorder %s36, 1
      %p137 = por %p135, %p136
      %p139 = scmp.ne.s32.totalorder %s122, %s138
      %p140 = scmp.eq.s32.totalorder %s36, 0
      %p141 = por %p139, %p140
      %s142 = ssub.s32 %s30, %s37
      %p143 = scmp.eq.s32.totalorder %s142, 0
      %s145 = sadd.s32 %s144, 1
      %s146 = scalar_select %p143, %s144, %s145
      %p149 = pneg %p143
      %p150 = scmp.eq.s32.totalorder %s30, 1
      %p151 = por %p149, %p150
      %p152 = scmp.ne.s32.totalorder %s144, %s147
      %p153 = scmp.eq.s32.totalorder %s30, 0
      %p154 = por %p152, %p153
      %p155 = scmp.ne.s32.totalorder %s144, %s147
      %p156 = scmp.eq.s32.totalorder %s35, 1
      %p157 = por %p155, %p156
      %p158 = scmp.ne.s32.totalorder %s147, %s148
      %p159 = scmp.eq.s32.totalorder %s35, 0
      %p160 = por %p158, %p159
      %p161 = scmp.ne.s32.totalorder %s147, %s148
      %p162 = scmp.eq.s32.totalorder %s36, 1
      %p163 = por %p161, %p162
      %p165 = scmp.ne.s32.totalorder %s148, %s164
      %p166 = scmp.eq.s32.totalorder %s36, 0
      %p167 = por %p165, %p166
      %p168 = scmp.le.s32.totalorder 1, %s30
      %p169 = scmp.lt.s32.totalorder %s30, 3
      %p170 = pnand %p168, %p169
      %p171 = pneg %p170
      // Predicated region
      $region9: #{dot_product_attention.1} parent=5 // pred_check
        _
      $region10: #{dot_product_attention.1} parent=5 // pred_check_branch
        %173 = sbr.rel (%p170) target = $region12
      $region11: #{dot_product_attention.1} parent=5 // pred_region
        %s174 = ssub.s32 %s30, 1
      $region12: #{dot_product_attention.1} parent=5 // pred_fallthru
        _
      %p175 = scmp.lt.s32.totalorder %s30, 2
      // Predicated region
      $region13: #{dot_product_attention.1} parent=5 // pred_check
        %p176 = pneg %p175
      $region14: #{dot_product_attention.1} parent=5 // pred_check_branch
        %178 = sbr.rel (%p176) target = $region16
      $region15: #{dot_product_attention.1} parent=5 // pred_region
        // Predicated region
        $region17: #{dot_product_attention.1} parent=15 // pred_check
          %p179 = pneg %p50
        $region18: #{dot_product_attention.1} parent=15 // pred_check_branch
          %181 = sbr.rel (%p179) target = $region20
        $region19: #{dot_product_attention.1} parent=15 // pred_region
          %s182 = sand.u32 %s40, 1
          %s183 = scalar_lea.sflag [#allocation5], %s182
          %s184 = sand.u32 %s40, 1
          %s185 = smul.addr %s184, 8
          %s186 = scalar_lea.vmem [#allocation4], %s185
          %s188 = ssub.s32 128, 128
          %189 = vsyncadd %s183, %s188
          %s190 = smul.addr %s30, 128
          %s191 = scalar_lea.hbm %s1, %s190
          %s193 = sshll.u32 %s186, 4
          %s194 = int_to_ptr.vmem [resolvable:$true] %s193
          %196 = dma.hbm_to_vmem [thread:$0]  %s191, 128, %s194, %s183
        $region20: #{dot_product_attention.1} parent=15 // pred_fallthru
          _
        // Predicated region
        $region21: #{dot_product_attention.1} parent=15 // pred_check
          %p197 = pneg %p76
        $region22: #{dot_product_attention.1} parent=15 // pred_check_branch
          %199 = sbr.rel (%p197) target = $region24
        $region23: #{dot_product_attention.1} parent=15 // pred_region
          %s200 = sand.u32 %s30, 1
          %s201 = scalar_lea.sflag [#allocation8], %s200
          %s202 = sand.u32 %s66, 1
          %s203 = smul.addr %s202, 8
          %s204 = scalar_lea.vmem [#allocation7], %s203
          %s206 = ssub.s32 128, 128
          %207 = vsyncadd %s201, %s206
          %s208 = smul.addr %s30, 128
          %s209 = scalar_lea.hbm %s2, %s208
          %s211 = sshll.u32 %s204, 4
          %s212 = int_to_ptr.vmem [resolvable:$true] %s211
          %214 = dma.hbm_to_vmem [thread:$0]  %s209, 128, %s212, %s201
        $region24: #{dot_product_attention.1} parent=15 // pred_fallthru
          _
        // Predicated region
        $region25: #{dot_product_attention.1} parent=15 // pred_check
          %p215 = pneg %p102
        $region26: #{dot_product_attention.1} parent=15 // pred_check_branch
          %217 = sbr.rel (%p215) target = $region28
        $region27: #{dot_product_attention.1} parent=15 // pred_region
          %s218 = sand.u32 %s30, 1
          %s219 = scalar_lea.sflag [#allocation8], %s218
          %s220 = sand.u32 %s92, 1
          %s221 = smul.addr %s220, 8
          %s222 = scalar_lea.vmem [#allocation9], %s221
          %s224 = ssub.s32 128, 128
          %225 = vsyncadd %s219, %s224
          %s226 = smul.addr %s30, 128
          %s227 = scalar_lea.hbm %s3, %s226
          %s229 = sshll.u32 %s222, 4
          %s230 = int_to_ptr.vmem [resolvable:$true] %s229
          %232 = dma.hbm_to_vmem [thread:$0]  %s227, 128, %s230, %s219
        $region28: #{dot_product_attention.1} parent=15 // pred_fallthru
          _
      $region16: #{dot_product_attention.1} parent=5 // pred_fallthru
        _
      %p233 = scmp.le.s32.totalorder 1, %s30
      %p234 = scmp.lt.s32.totalorder %s30, 3
      %p235 = pnand %p233, %p234
      %p236 = pneg %p235
      // Predicated region
      $region29: #{dot_product_attention.1} parent=5 // pred_check
        _
      $region30: #{dot_product_attention.1} parent=5 // pred_check_branch
        %238 = sbr.rel (%p235) target = $region32
      $region31: #{dot_product_attention.1} parent=5 // pred_region
        %s239 = ssub.s32 %s30, 1
        %s240 = sand.u32 %s43, 1
        %s241 = scalar_lea.sflag [#allocation5], %s240
        %s242 = sand.u32 %s43, 1
        %s243 = smul.addr %s242, 8
        %s244 = scalar_lea.vmem [#allocation4], %s243
        // Predicated region
        $region33: #{dot_product_attention.1} parent=31 // pred_check
          %p245 = pneg %p56
        $region34: #{dot_product_attention.1} parent=31 // pred_check_branch
          %247 = sbr.rel (%p245) target = $region36
        $region35: #{dot_product_attention.1} parent=31 // pred_region
          %248 = dma.done %s241, 128
        $region36: #{dot_product_attention.1} parent=31 // pred_fallthru
          _
        %s249 = sand.u32 %s35, 1
        %s250 = scalar_lea.sflag [#allocation8], %s249
        %s251 = sand.u32 %s69, 1
        %s252 = smul.addr %s251, 8
        %s253 = scalar_lea.vmem [#allocation7], %s252
        // Predicated region
        $region37: #{dot_product_attention.1} parent=31 // pred_check
          %p254 = pneg %p82
        $region38: #{dot_product_attention.1} parent=31 // pred_check_branch
          %256 = sbr.rel (%p254) target = $region40
        $region39: #{dot_product_attention.1} parent=31 // pred_region
          %257 = dma.done %s250, 128
        $region40: #{dot_product_attention.1} parent=31 // pred_fallthru
          _
        %s258 = sand.u32 %s35, 1
        %s259 = scalar_lea.sflag [#allocation8], %s258
        %s260 = sand.u32 %s95, 1
        %s261 = smul.addr %s260, 8
        %s262 = scalar_lea.vmem [#allocation9], %s261
        // Predicated region
        $region41: #{dot_product_attention.1} parent=31 // pred_check
          %p263 = pneg %p108
        $region42: #{dot_product_attention.1} parent=31 // pred_check_branch
          %265 = sbr.rel (%p263) target = $region44
        $region43: #{dot_product_attention.1} parent=31 // pred_region
          %266 = dma.done %s259, 128
        $region44: #{dot_product_attention.1} parent=31 // pred_fallthru
          _
        %s267 = sand.u32 %s43, 1
        %s268 = scalar_lea.sflag [#allocation5], %s267
        %s269 = sand.u32 %s43, 1
        %s270 = smul.addr %s269, 8
        %s271 = scalar_lea.vmem [#allocation4], %s270
        %p272 = pneg %p56
        %p273 = pneg %p53
        %s274 = sand.u32 %s35, 1
        %s275 = scalar_lea.sflag [#allocation8], %s274
        %s276 = sand.u32 %s69, 1
        %s277 = smul.addr %s276, 8
        %s278 = scalar_lea.vmem [#allocation7], %s277
        %p279 = pneg %p82
        %p280 = pneg %p79
        %s281 = sand.u32 %s35, 1
        %s282 = scalar_lea.sflag [#allocation8], %s281
        %s283 = sand.u32 %s95, 1
        %s284 = smul.addr %s283, 8
        %s285 = scalar_lea.vmem [#allocation9], %s284
        %p286 = pneg %p108
        %p287 = pneg %p105
        %p288 = pneg %p134
        %p289 = pneg %p131
        %s290 = sand.u32 %s121, 1
        %s291 = scalar_lea.sflag [#allocation6], %s290
        %s292 = sand.u32 %s121, 1
        %s293 = smul.addr %s292, 8
        %s294 = scalar_lea.vmem [#allocation10], %s293
        %p295 = pneg %p160
        %p296 = pneg %p157
        %s297 = sand.u32 %s147, 1
        %s298 = scalar_lea.sflag [#allocation12], %s297
        %s299 = sand.u32 %s147, 1
        %s300 = smul.addr %s299, 8
        %s301 = scalar_lea.vmem [#allocation11], %s300
        %v302 = vld [vmem:[%s244] sm:$0xff]
        %v303 = vmul.f32 %v302, 0.17677669
        %v304 = vld [vmem:[%s253] sm:$0xff]
        %v305 = vld [vmem:[%s262] sm:$0xff]
        %vm306 = vcmask 261120
        %v308 = vsel %vm306, %v303, 0
        %v311 = vsel %vm306, %v304, 0
        %313 = vmatprep.subr.mxu0 0.0
        %314 = vmatpush1.xpose.msra.mxu0 %v311
        %315 = vmatprep.subr.mxu0 0.0
        %316 = vmatpush1.xpose.msra.mxu0 0.0
        %317 = vmatprep.subr.mxu0 0.0
        %318 = vmatpush1.xpose.msra.mxu0 0.0
        %319 = vmatprep.subr.mxu0 0.0
        %320 = vmatpush1.xpose.msra.mxu0 0.0
        %321 = vmatprep.subr.mxu0 0.0
        %322 = vmatpush1.xpose.msra.mxu0 0.0
        %323 = vmatprep.subr.mxu0 0.0
        %324 = vmatpush1.xpose.msra.mxu0 0.0
        %325 = vmatprep.subr.mxu0 0.0
        %326 = vmatpush1.xpose.msra.mxu0 0.0
        %327 = vmatprep.subr.mxu0 0.0
        %328 = vmatpush1.xpose.msra.mxu0 0.0
        %329 = vmatprep.subr.mxu0 0.0
        %330 = vmatpush1.xpose.msra.mxu0 0.0
        %331 = vmatprep.subr.mxu0 0.0
        %332 = vmatpush1.xpose.msra.mxu0 0.0
        %333 = vmatprep.subr.mxu0 0.0
        %334 = vmatpush1.xpose.msra.mxu0 0.0
        %335 = vmatprep.subr.mxu0 0.0
        %336 = vmatpush1.xpose.msra.mxu0 0.0
        %337 = vmatprep.subr.mxu0 0.0
        %338 = vmatpush1.xpose.msra.mxu0 0.0
        %339 = vmatprep.subr.mxu0 0.0
        %340 = vmatpush1.xpose.msra.mxu0 0.0
        %341 = vmatprep.subr.mxu0 0.0
        %342 = vmatpush1.xpose.msra.mxu0 0.0
        %343 = vmatprep.subr.mxu0 0.0
        %344 = vmatpush1.xpose.msra.mxu0 0.0
        %345 = vmatprep.subr.mxu0 0.0
        %346 = vmatpush1.xpose.msra.mxu0 0.0
        %347 = vmatprep.subr.mxu0 0.0
        %348 = vmatpush1.xpose.msra.mxu0 0.0
        %349 = vmatprep.subr.mxu0 0.0
        %350 = vmatpush1.xpose.msra.mxu0 0.0
        %351 = vmatprep.subr.mxu0 0.0
        %352 = vmatpush1.xpose.msra.mxu0 0.0
        %353 = vmatprep.subr.mxu0 0.0
        %354 = vmatpush1.xpose.msra.mxu0 0.0
        %355 = vmatprep.subr.mxu0 0.0
        %356 = vmatpush1.xpose.msra.mxu0 0.0
        %357 = vmatprep.subr.mxu0 0.0
        %358 = vmatpush1.xpose.msra.mxu0 0.0
        %359 = vmatprep.subr.mxu0 0.0
        %360 = vmatpush1.xpose.msra.mxu0 0.0
        %361 = vmatprep.subr.mxu0 0.0
        %362 = vmatpush1.xpose.msra.mxu0 0.0
        %363 = vmatprep.subr.mxu0 0.0
        %364 = vmatpush1.xpose.msra.mxu0 0.0
        %365 = vmatprep.subr.mxu0 0.0
        %366 = vmatpush1.xpose.msra.mxu0 0.0
        %367 = vmatprep.subr.mxu0 0.0
        %368 = vmatpush1.xpose.msra.mxu0 0.0
        %369 = vmatprep.subr.mxu0 0.0
        %370 = vmatpush1.xpose.msra.mxu0 0.0
        %371 = vmatprep.subr.mxu0 0.0
        %372 = vmatpush1.xpose.msra.mxu0 0.0
        %373 = vmatprep.subr.mxu0 0.0
        %374 = vmatpush1.xpose.msra.mxu0 0.0
        %375 = vmatprep.subr.mxu0 0.0
        %376 = vmatpush1.xpose.msra.mxu0 0.0
        %377 = vmatprep.mubr.f32.mxu0 0.0
        %378 = vmatmul.mubr.f32.gmra.mrb[0].mxu0 %v308
        %v379 = vpop.f32.mrb[0].mxu0
        %v380 = vadd.f32 0.0, %v379
        %v381 = vpop.f32.mrb[0].mxu0
        %382 = vdwg.mxu0
        %s383 = sld [smem:[#allocation3 + %s35]]
        %v384 = vstv %s383
        %v385 = vlaneseq
        %v386 = vand.u32 %v385, 127
        %vm387 = vcmp.lt.s32.totalorder %v386, %v384
        %v388 = vsel %vm387, %v380, -1000000.0
        %vm389 = vcmask 64512
        %v390 = vsel %vm389, %v388, -inf
        %391 = vmax.xlane.f32.xlu0 %v390
        %v392 = vpop.xlane.xlu0 %391
        %v393 = vsub.f32 %v388, %v392
        %v394 = vmul.f32 %v393, 1.442695
        %v395 = vpow.pop %v394
        %v396 = vsel %vm389, %v395, 0.0
        %397 = vadd.xlane.f32.xlu0 %v396
        %v398 = vpop.xlane.xlu0 %397
        %v399 = vrcp.pop %v398
        %v400 = vmul.f32 %v395, %v399
        %401 = vst.msk [vmem:[%s301] sm:$0xff] %vm389, %v400
        %v403 = vsel %vm389, %v400, 0
        %405 = vmatprep.subr.mxu0 0.0
        %406 = vmatpush1.msra.mxu0 %v305
        %407 = vmatprep.subr.mxu0 0.0
        %408 = vmatpush1.msra.mxu0 0.0
        %409 = vmatprep.subr.mxu0 0.0
        %410 = vmatpush1.msra.mxu0 0.0
        %411 = vmatprep.subr.mxu0 0.0
        %412 = vmatpush1.msra.mxu0 0.0
        %413 = vmatprep.subr.mxu0 0.0
        %414 = vmatpush1.msra.mxu0 0.0
        %415 = vmatprep.subr.mxu0 0.0
        %416 = vmatpush1.msra.mxu0 0.0
        %417 = vmatprep.subr.mxu0 0.0
        %418 = vmatpush1.msra.mxu0 0.0
        %419 = vmatprep.subr.mxu0 0.0
        %420 = vmatpush1.msra.mxu0 0.0
        %421 = vmatprep.subr.mxu0 0.0
        %422 = vmatpush1.msra.mxu0 0.0
        %423 = vmatprep.subr.mxu0 0.0
        %424 = vmatpush1.msra.mxu0 0.0
        %425 = vmatprep.subr.mxu0 0.0
        %426 = vmatpush1.msra.mxu0 0.0
        %427 = vmatprep.subr.mxu0 0.0
        %428 = vmatpush1.msra.mxu0 0.0
        %429 = vmatprep.subr.mxu0 0.0
        %430 = vmatpush1.msra.mxu0 0.0
        %431 = vmatprep.subr.mxu0 0.0
        %432 = vmatpush1.msra.mxu0 0.0
        %433 = vmatprep.subr.mxu0 0.0
        %434 = vmatpush1.msra.mxu0 0.0
        %435 = vmatprep.subr.mxu0 0.0
        %436 = vmatpush1.msra.mxu0 0.0
        %437 = vmatprep.subr.mxu0 0.0
        %438 = vmatpush1.msra.mxu0 0.0
        %439 = vmatprep.subr.mxu0 0.0
        %440 = vmatpush1.msra.mxu0 0.0
        %441 = vmatprep.subr.mxu0 0.0
        %442 = vmatpush1.msra.mxu0 0.0
        %443 = vmatprep.subr.mxu0 0.0
        %444 = vmatpush1.msra.mxu0 0.0
        %445 = vmatprep.subr.mxu0 0.0
        %446 = vmatpush1.msra.mxu0 0.0
        %447 = vmatprep.subr.mxu0 0.0
        %448 = vmatpush1.msra.mxu0 0.0
        %449 = vmatprep.subr.mxu0 0.0
        %450 = vmatpush1.msra.mxu0 0.0
        %451 = vmatprep.subr.mxu0 0.0
        %452 = vmatpush1.msra.mxu0 0.0
        %453 = vmatprep.subr.mxu0 0.0
        %454 = vmatpush1.msra.mxu0 0.0
        %455 = vmatprep.subr.mxu0 0.0
        %456 = vmatpush1.msra.mxu0 0.0
        %457 = vmatprep.subr.mxu0 0.0
        %458 = vmatpush1.msra.mxu0 0.0
        %459 = vmatprep.subr.mxu0 0.0
        %460 = vmatpush1.msra.mxu0 0.0
        %461 = vmatprep.subr.mxu0 0.0
        %462 = vmatpush1.msra.mxu0 0.0
        %463 = vmatprep.subr.mxu0 0.0
        %464 = vmatpush1.msra.mxu0 0.0
        %465 = vmatprep.subr.mxu0 0.0
        %466 = vmatpush1.msra.mxu0 0.0
        %467 = vmatprep.subr.mxu0 0.0
        %468 = vmatpush1.msra.mxu0 0.0
        %469 = vmatprep.mubr.f32.mxu0 0.0
        %470 = vmatmul.mubr.f32.gmra.mrb[0].mxu0 %v403
        %v471 = vpop.f32.mrb[0].mxu0
        %v472 = vadd.f32 0.0, %v471
        %v473 = vpop.f32.mrb[0].mxu0
        %474 = vdwg.mxu0
        %475 = vst.msk [vmem:[%s294] sm:$0xff] %vm306, %v472
        %s476 = sand.u32 %s121, 1
        %s477 = scalar_lea.sflag [#allocation6], %s476
        %s478 = sand.u32 %s121, 1
        %s479 = smul.addr %s478, 8
        %s480 = scalar_lea.vmem [#allocation10], %s479
        %s481 = sand.u32 %s147, 1
        %s482 = scalar_lea.sflag [#allocation12], %s481
        %s483 = sand.u32 %s147, 1
        %s484 = smul.addr %s483, 8
        %s485 = scalar_lea.vmem [#allocation11], %s484
        // Predicated region
        $region45: #{dot_product_attention.1} parent=31 // pred_check
          %p486 = pneg %p131
        $region46: #{dot_product_attention.1} parent=31 // pred_check_branch
          %488 = sbr.rel (%p486) target = $region48
        $region47: #{dot_product_attention.1} parent=31 // pred_region
          %s490 = ssub.s32 128, 128
          %491 = vsyncadd %s477, %s490
          %s492 = smul.addr %s35, 128
          %s493 = scalar_lea.hbm %s4, %s492
          %s495 = sshll.u32 %s480, 4
          %s496 = int_to_ptr.vmem [resolvable:$true] %s495
          %498 = dma.vmem_to_hbm [thread:$0]  %s496, 128, %s493, %s477
        $region48: #{dot_product_attention.1} parent=31 // pred_fallthru
          _
        // Predicated region
        $region49: #{dot_product_attention.1} parent=31 // pred_check
          %p499 = pneg %p157
        $region50: #{dot_product_attention.1} parent=31 // pred_check_branch
          %501 = sbr.rel (%p499) target = $region52
        $region51: #{dot_product_attention.1} parent=31 // pred_region
          %s503 = ssub.s32 128, 128
          %504 = vsyncadd %s482, %s503
          %s505 = smul.addr %s35, 128
          %s506 = scalar_lea.hbm %s5, %s505
          %s508 = sshll.u32 %s485, 4
          %s509 = int_to_ptr.vmem [resolvable:$true] %s508
          %511 = dma.vmem_to_hbm [thread:$0]  %s509, 128, %s506, %s482
        $region52: #{dot_product_attention.1} parent=31 // pred_fallthru
          _
      $region32: #{dot_product_attention.1} parent=5 // pred_fallthru
        _
      %p512 = scmp.le.s32.totalorder 2, %s30
      // Predicated region
      $region53: #{dot_product_attention.1} parent=5 // pred_check
        %p513 = pneg %p512
      $region54: #{dot_product_attention.1} parent=5 // pred_check_branch
        %515 = sbr.rel (%p513) target = $region56
      $region55: #{dot_product_attention.1} parent=5 // pred_region
        %s516 = ssub.s32 %s30, 2
        // Predicated region
        $region57: #{dot_product_attention.1} parent=55 // pred_check
          %p517 = pneg %p137
        $region58: #{dot_product_attention.1} parent=55 // pred_check_branch
          %519 = sbr.rel (%p517) target = $region60
        $region59: #{dot_product_attention.1} parent=55 // pred_region
          %s520 = sand.u32 %s122, 1
          %s521 = scalar_lea.sflag [#allocation6], %s520
          %s522 = sand.u32 %s122, 1
          %s523 = smul.addr %s522, 8
          %s524 = scalar_lea.vmem [#allocation10], %s523
          %525 = dma.done %s521, 128
        $region60: #{dot_product_attention.1} parent=55 // pred_fallthru
          _
        // Predicated region
        $region61: #{dot_product_attention.1} parent=55 // pred_check
          %p526 = pneg %p163
        $region62: #{dot_product_attention.1} parent=55 // pred_check_branch
          %528 = sbr.rel (%p526) target = $region64
        $region63: #{dot_product_attention.1} parent=55 // pred_region
          %s529 = sand.u32 %s148, 1
          %s530 = scalar_lea.sflag [#allocation12], %s529
          %s531 = sand.u32 %s148, 1
          %s532 = smul.addr %s531, 8
          %s533 = scalar_lea.vmem [#allocation11], %s532
          %534 = dma.done %s530, 128
        $region64: #{dot_product_attention.1} parent=55 // pred_fallthru
          _
      $region56: #{dot_product_attention.1} parent=5 // pred_fallthru
        _
    $region6: #{dot_product_attention.1} parent=1 // loop_footer
      %s34 = sadd.s32 1, %s30
    $region7: #{dot_product_attention.1} parent=1 // loop_footer_branch
      %29 = sbr.rel target = $region3
    $region8: #{dot_product_attention.1} parent=1 // loop_exit
      _
    %535 = vsyncpa [#allocation5], 1
    %s536 = scalar_lea.sflag [#allocation5], 1
    %537 = vsyncpa %s536, 1
    %538 = vsyncpa [#allocation8], 1
    %s539 = scalar_lea.sflag [#allocation8], 1
    %540 = vsyncpa %s539, 1
    %541 = vsyncpa [#allocation6], 1
    %s542 = scalar_lea.sflag [#allocation6], 1
    %543 = vsyncpa %s542, 1
    %544 = vsyncpa [#allocation12], 1
    %s545 = scalar_lea.sflag [#allocation12], 1
    %546 = vsyncpa %s545, 1

</llo_original>
